<compile_context>
chip_gen: v5e
topology: v5e:2x2
jax: 0.10.0
libtpu: 0.0.40
codegen_flags: <defaults>
</compile_context>

<pallas_src>
import functools

import jax
import jax.numpy as jnp
from jax.experimental import pallas as pl
from jax.experimental.pallas import tpu as pltpu

_NEG_BIG = -1e30  # logit value for padded class lanes -> exp() == 0


def _round_up(n: int, m: int) -> int:
    return ((n + m - 1) // m) * m


# ---------------------------------------------------------------------------
# Kernel
# ---------------------------------------------------------------------------
def _mlp_softmax_kernel(x_ref, w1_ref, b1_ref, w2_ref, b2_ref, o_ref):
    # Layer 1: Linear (bf16 MXU, f32 accumulate) + ReLU.
    # Dropout(p=0.2) is identity at inference time.
    # TODO(synk): training-mode dropout (random masking) is not implemented; eval-mode only.
    h = jnp.dot(x_ref[...], w1_ref[...], preferred_element_type=jnp.float32)
    h = jnp.maximum(h + b1_ref[...], 0.0)

    # Layer 2: Linear. Padded W2 rows/cols are zero; padded b2 lanes are -1e30,
    # so those logits vanish under softmax.
    logits = jnp.dot(h.astype(jnp.bfloat16), w2_ref[...],
                     preferred_element_type=jnp.float32)
    logits = logits + b2_ref[...]

    # Softmax over the class (last) axis. Exact divide -> exact row sums.
    m = jnp.max(logits, axis=-1, keepdims=True)
    e = jnp.exp(logits - m)
    denom = jnp.sum(e, axis=-1, keepdims=True)
    o_ref[...] = (e / denom).astype(o_ref.dtype)


# ---------------------------------------------------------------------------
# One-time (parameter-load time) preparation: pad + cast, out of the hot path.
# ---------------------------------------------------------------------------
def prepare_params(w1, b1, w2, b2):
    """Pad K/H/C to multiples of 128, cast weights to bf16. Call once offline."""
    d_in, h_dim = w1.shape
    c_dim = w2.shape[1]
    Kp = _round_up(d_in, 128)
    Hp = _round_up(h_dim, 128)
    Cp = _round_up(c_dim, 128)

    w1p = jnp.zeros((Kp, Hp), jnp.float32).at[:d_in, :h_dim].set(w1).astype(jnp.bfloat16)
    b1p = jnp.zeros((1, Hp), jnp.float32).at[:, :h_dim].set(b1)
    w2p = jnp.zeros((Hp, Cp), jnp.float32).at[:h_dim, :c_dim].set(w2).astype(jnp.bfloat16)
    b2p = jnp.full((1, Cp), _NEG_BIG, jnp.float32).at[:, :c_dim].set(b2)
    return w1p, b1p, w2p, b2p


# ---------------------------------------------------------------------------
# Hot path
# ---------------------------------------------------------------------------
@functools.partial(jax.jit, static_argnames=("num_classes", "block_rows"))
def feedforward_forward(x, w1p, b1p, w2p, b2p, *, num_classes, block_rows=256):
    """x: (B, d_in) f32; pre-padded params from prepare_params().

    Returns (B, num_classes) softmax probabilities (f32).
    """
    B, d_in = x.shape
    Kp, Hp = w1p.shape
    Cp = w2p.shape[1]

    # Minimal row padding (<=7 rows) so the sublane constraint is met; K padded
    # to the offline-chosen Kp. Single fused pad+cast under jit.
    Bp = _round_up(max(B, 1), 8)
    xp = jnp.pad(x, ((0, Bp - B), (0, Kp - d_in))).astype(jnp.bfloat16)

    # Row tile: aim for >=2 grid steps (v7x megacore) when there is enough work,
    # capped at block_rows to limit VMEM-resident intermediates.
    tm = min(block_rows, _round_up(-(-Bp // 2), 8)) if Bp > 8 else Bp
    grid = (pl.cdiv(Bp, tm),)

    cost = pl.CostEstimate(
        flops=2 * Bp * (Kp * Hp + Hp * Cp),
        transcendentals=Bp * Cp,
        bytes_accessed=(Bp * Kp * 2 + Kp * Hp * 2 + Hp * 4
                        + Hp * Cp * 2 + Cp * 4 + Bp * Cp * 4),
    )

    out_padded = pl.pallas_call(
        _mlp_softmax_kernel,
        out_shape=jax.ShapeDtypeStruct((Bp, Cp), jnp.float32),
        grid=grid,
        in_specs=[
            pl.BlockSpec((tm, Kp), lambda i: (i, 0)),   # x: row-tiled, lane-dense K
            pl.BlockSpec((Kp, Hp), lambda i: (0, 0)),   # W1: VMEM-resident
            pl.BlockSpec((1, Hp), lambda i: (0, 0)),    # b1: VMEM-resident
            pl.BlockSpec((Hp, Cp), lambda i: (0, 0)),   # W2: VMEM-resident
            pl.BlockSpec((1, Cp), lambda i: (0, 0)),    # b2: VMEM-resident
        ],
        out_specs=pl.BlockSpec((tm, Cp), lambda i: (i, 0)),
        compiler_params=pltpu.CompilerParams(
            dimension_semantics=("parallel",),
            vmem_limit_bytes=32 * 1024 * 1024,
        ),
        cost_estimate=cost,
    )(xp, w1p, b1p, w2p, b2p)

    # Slice away row padding and padded class lanes (do this before any log()).
    return out_padded[:B, :num_classes]


# ---------------------------------------------------------------------------
# Reference + demo
# ---------------------------------------------------------------------------
def init_params(key, d_in, hidden, num_classes):
    """Deterministic synthetic init mimicking nn.Linear's U(-1/sqrt(fan_in), ...)."""
    k1, k2, k3, k4 = jax.random.split(key, 4)
    bound1 = 1.0 / jnp.sqrt(d_in)
    bound2 = 1.0 / jnp.sqrt(hidden)
    w1 = jax.random.uniform(k1, (d_in, hidden), jnp.float32, -bound1, bound1)
    b1 = jax.random.uniform(k2, (1, hidden), jnp.float32, -bound1, bound1)
    w2 = jax.random.uniform(k3, (hidden, num_classes), jnp.float32, -bound2, bound2)
    b2 = jax.random.uniform(k4, (1, num_classes), jnp.float32, -bound2, bound2)
    return w1, b1, w2, b2


def reference_forward(x, w1, b1, w2, b2):
    h = jnp.maximum(x @ w1 + b1, 0.0)
    logits = h @ w2 + b2
    return jax.nn.softmax(logits, axis=-1)


if __name__ == "__main__":
    B, D_IN, HIDDEN, NUM_CLASSES = 8, 32, 64, 4

    key = jax.random.PRNGKey(0)
    kx, kp = jax.random.split(key)
    x = jax.random.normal(kx, (B, D_IN), dtype=jnp.float32)
    w1, b1, w2, b2 = init_params(kp, D_IN, HIDDEN, NUM_CLASSES)

    # One-time parameter preparation (pad + bf16 cast) -- not in the hot path.
    w1p, b1p, w2p, b2p = prepare_params(w1, b1, w2, b2)

    out = feedforward_forward(x, w1p, b1p, w2p, b2p, num_classes=NUM_CLASSES)
    out = jax.block_until_ready(out)

    ref = reference_forward(x, w1, b1, w2, b2)
    assert out.shape == (B, NUM_CLASSES)
    # Elementwise tolerance accounts for the bf16 MXU path (f32 accumulation).
    assert jnp.allclose(out, ref, atol=1e-2, rtol=1e-2)
    # Exact softmax normalization (exact divide in the kernel).
    assert jnp.allclose(jnp.sum(out, axis=-1), 1.0, atol=1e-3)

    print("KERNEL_OK")
</pallas_src>

<mosaic_0001>
module attributes {stable_mosaic.version = 11 : i64} {
  func.func @_mlp_softmax_kernel(%arg0: i32, %arg1: memref<8x128xbf16, #tpu.memory_space<vmem>>, %arg2: memref<128x128xbf16, #tpu.memory_space<vmem>>, %arg3: memref<1x128xf32, #tpu.memory_space<vmem>>, %arg4: memref<128x128xbf16, #tpu.memory_space<vmem>>, %arg5: memref<1x128xf32, #tpu.memory_space<vmem>>, %arg6: memref<8x128xf32, #tpu.memory_space<vmem>>) attributes {dimension_semantics = [#tpu.dimension_semantics<parallel>], iteration_bounds = array<i64: 1>, scalar_prefetch = 0 : i64, scratch_operands = 0 : i64, tpu.core_type = #tpu.core_type<tc>, window_params = [{transform_indices = @transform_0, window_bounds = array<i64: 8, 128>}, {pipeline_mode = #tpu.pipeline_mode<synchronous>, transform_indices = @transform_1, window_bounds = array<i64: 128, 128>}, {pipeline_mode = #tpu.pipeline_mode<synchronous>, transform_indices = @transform_2, window_bounds = array<i64: 1, 128>}, {pipeline_mode = #tpu.pipeline_mode<synchronous>, transform_indices = @transform_3, window_bounds = array<i64: 128, 128>}, {pipeline_mode = #tpu.pipeline_mode<synchronous>, transform_indices = @transform_4, window_bounds = array<i64: 1, 128>}, {transform_indices = @transform_5, window_bounds = array<i64: 8, 128>}]} {
    %c0 = arith.constant 0 : index
    %c0_0 = arith.constant 0 : index
    %0 = vector.load %arg1[%c0, %c0_0] : memref<8x128xbf16, #tpu.memory_space<vmem>>, vector<8x128xbf16>
    %c0_1 = arith.constant 0 : index
    %c0_2 = arith.constant 0 : index
    %1 = vector.load %arg2[%c0_1, %c0_2] : memref<128x128xbf16, #tpu.memory_space<vmem>>, vector<128x128xbf16>
    %cst = arith.constant dense<0.000000e+00> : vector<8x128xf32>
    %2 = tpu.matmul %0, %1, %cst {dimension_numbers = #tpu.dot_dimension_numbers<[1], [0], [0], [1], [0, 0, 1, 1], [], []>} : vector<8x128xbf16>, vector<128x128xbf16>, vector<8x128xf32> -> vector<8x128xf32>
    %c0_3 = arith.constant 0 : index
    %c0_4 = arith.constant 0 : index
    %3 = vector.load %arg3[%c0_3, %c0_4] : memref<1x128xf32, #tpu.memory_space<vmem>>, vector<1x128xf32>
    %4 = vector.broadcast %3 : vector<1x128xf32> to vector<8x128xf32>
    %5 = arith.addf %2, %4 : vector<8x128xf32>
    %cst_5 = arith.constant 0.000000e+00 : f32
    %6 = vector.broadcast %cst_5 : f32 to vector<8x128xf32>
    %7 = arith.maximumf %5, %6 : vector<8x128xf32>
    %8 = arith.truncf %7 : vector<8x128xf32> to vector<8x128xbf16>
    %c0_6 = arith.constant 0 : index
    %c0_7 = arith.constant 0 : index
    %9 = vector.load %arg4[%c0_6, %c0_7] : memref<128x128xbf16, #tpu.memory_space<vmem>>, vector<128x128xbf16>
    %cst_8 = arith.constant dense<0.000000e+00> : vector<8x128xf32>
    %10 = tpu.matmul %8, %9, %cst_8 {dimension_numbers = #tpu.dot_dimension_numbers<[1], [0], [0], [1], [0, 0, 1, 1], [], []>} : vector<8x128xbf16>, vector<128x128xbf16>, vector<8x128xf32> -> vector<8x128xf32>
    %c0_9 = arith.constant 0 : index
    %c0_10 = arith.constant 0 : index
    %11 = vector.load %arg5[%c0_9, %c0_10] : memref<1x128xf32, #tpu.memory_space<vmem>>, vector<1x128xf32>
    %12 = vector.broadcast %11 : vector<1x128xf32> to vector<8x128xf32>
    %13 = arith.addf %10, %12 : vector<8x128xf32>
    %cst_11 = arith.constant dense<0xFF800000> : vector<8xf32>
    %14 = vector.multi_reduction <maximumf>, %13, %cst_11 [1] : vector<8x128xf32> to vector<8xf32>
    %15 = vector.shape_cast %14 : vector<8xf32> to vector<8x1xf32>
    %16 = vector.broadcast %15 : vector<8x1xf32> to vector<8x128xf32>
    %17 = arith.subf %13, %16 : vector<8x128xf32>
    %18 = math.exp %17 : vector<8x128xf32>
    %cst_12 = arith.constant dense<0.000000e+00> : vector<8xf32>
    %19 = vector.multi_reduction <add>, %18, %cst_12 [1] : vector<8x128xf32> to vector<8xf32>
    %20 = vector.shape_cast %19 : vector<8xf32> to vector<8x1xf32>
    %21 = vector.broadcast %20 : vector<8x1xf32> to vector<8x128xf32>
    %22 = arith.divf %18, %21 : vector<8x128xf32>
    %c0_13 = arith.constant 0 : index
    %c0_14 = arith.constant 0 : index
    %23 = vector.load %arg6[%c0_13, %c0_14] : memref<8x128xf32, #tpu.memory_space<vmem>>, vector<8x128xf32>
    tpu.vector_store %arg6[%c0_13, %c0_14], %22 {strides = array<i32>} : memref<8x128xf32, #tpu.memory_space<vmem>>, vector<8x128xf32>,
    return
  }
  func.func @transform_0(%arg0: i32) -> (i32, i32) {
    %c0_i32 = arith.constant 0 : i32
    %c0_i32_0 = arith.constant 0 : i32
    return %arg0, %c0_i32 : i32, i32
  }
  func.func @transform_1(%arg0: i32) -> (i32, i32) {
    %c0_i32 = arith.constant 0 : i32
    %c0_i32_0 = arith.constant 0 : i32
    %c0_i32_1 = arith.constant 0 : i32
    return %c0_i32, %c0_i32_0 : i32, i32
  }
  func.func @transform_2(%arg0: i32) -> (i32, i32) {
    %c0_i32 = arith.constant 0 : i32
    %c0_i32_0 = arith.constant 0 : i32
    %c0_i32_1 = arith.constant 0 : i32
    return %c0_i32, %c0_i32_0 : i32, i32
  }
  func.func @transform_3(%arg0: i32) -> (i32, i32) {
    %c0_i32 = arith.constant 0 : i32
    %c0_i32_0 = arith.constant 0 : i32
    %c0_i32_1 = arith.constant 0 : i32
    return %c0_i32, %c0_i32_0 : i32, i32
  }
  func.func @transform_4(%arg0: i32) -> (i32, i32) {
    %c0_i32 = arith.constant 0 : i32
    %c0_i32_0 = arith.constant 0 : i32
    %c0_i32_1 = arith.constant 0 : i32
    return %c0_i32, %c0_i32_0 : i32, i32
  }
  func.func @transform_5(%arg0: i32) -> (i32, i32) {
    %c0_i32 = arith.constant 0 : i32
    %c0_i32_0 = arith.constant 0 : i32
    return %arg0, %c0_i32 : i32, i32
  }
}

</mosaic_0001>

<llo_original>
// kernel: feedforward_forward.1
$region0: #{feedforward_forward.1}
  #allocation0 [shape = 'u32[]', space=smem, size = 0x4, offset = 0x4, fixed_abs, tag = 'smem constant byte address 0x4 - core index']
  #allocation1 [shape = 'u32[72,128]{1,0:T(1,128)}', space=vmem, size = 0x9000, scoped, tag = 'internal scratch']
  %s0 = inlined_call_operand.vmem [shape: bf16[8,128], index: 0, kind: input, shape index: {}]
  %s1 = inlined_call_operand.hbm [shape: bf16[128,128], index: 1, kind: input, shape index: {}]
  %s2 = inlined_call_operand.vmem [shape: f32[1,128], index: 2, kind: input, shape index: {}]
  %s3 = inlined_call_operand.hbm [shape: bf16[128,128], index: 3, kind: input, shape index: {}]
  %s4 = inlined_call_operand.vmem [shape: f32[1,128], index: 4, kind: input, shape index: {}]
  %s5 = inlined_call_operand.vmem [shape: f32[8,128], index: 5, kind: output, shape index: {}]
  %s6 = sld [smem:[#allocation0]]
  $region38: #{feedforward_forward.1} parent=0
    _
  %s8 = ssub.s32 1, %s6
  %s9 = scalar_select 0, %s8, %s6
  $region1: #{feedforward_forward.1} parent=0
    #allocation2 [shape = 'u8[32768]{0}', space=vmem, size = 0x8000, scoped, tag = 'input window, operand 1, single buffered']
    #allocation3 [shape = 's32[1]{0}', space=sflag, size = 0x4, scoped, tag = 'scoped memory for feedforward_forward.1']
    #allocation4 [shape = 'u8[32768]{0}', space=vmem, size = 0x8000, scoped, tag = 'input window, operand 3, single buffered']
    #allocation5 [shape = 's32[1]{0}', space=sflag, size = 0x4, scoped, tag = 'scoped memory for feedforward_forward.1']
    %10 = vsyncpa [#allocation3], 0
    %11 = vsyncpa [#allocation5], 0
    // Predicated region
    $region2: #{feedforward_forward.1} parent=1 // pred_check
      _
    $region3: #{feedforward_forward.1} parent=1 // pred_check_branch
      %13 = sbr.rel (0) target = $region5
    $region4: #{feedforward_forward.1} parent=1 // pred_region
      _
    $region5: #{feedforward_forward.1} parent=1 // pred_fallthru
      _
    // Predicated region
    $region6: #{feedforward_forward.1} parent=1 // pred_check
      _
    $region7: #{feedforward_forward.1} parent=1 // pred_check_branch
      %15 = sbr.rel (0) target = $region9
    $region8: #{feedforward_forward.1} parent=1 // pred_region
      %17 = vsyncadd [#allocation3], 0
      %s18 = sshll.u32 %s1, 4
      %s19 = int_to_ptr.hbm [resolvable:$true] %s18
      %s20 = sshll.u32 [#allocation2], 4
      %s21 = int_to_ptr.vmem [resolvable:$true] %s20
      %26 = dma.hbm_to_vmem [thread:$0]  %s19, 1024, %s21, [#allocation3], 64, 64, 4
    $region9: #{feedforward_forward.1} parent=1 // pred_fallthru
      _
    // Predicated region
    $region10: #{feedforward_forward.1} parent=1 // pred_check
      _
    $region11: #{feedforward_forward.1} parent=1 // pred_check_branch
      %28 = sbr.rel (0) target = $region13
    $region12: #{feedforward_forward.1} parent=1 // pred_region
      _
    $region13: #{feedforward_forward.1} parent=1 // pred_fallthru
      _
    // Predicated region
    $region14: #{feedforward_forward.1} parent=1 // pred_check
      _
    $region15: #{feedforward_forward.1} parent=1 // pred_check_branch
      %30 = sbr.rel (0) target = $region17
    $region16: #{feedforward_forward.1} parent=1 // pred_region
      %32 = vsyncadd [#allocation5], 0
      %s33 = sshll.u32 %s3, 4
      %s34 = int_to_ptr.hbm [resolvable:$true] %s33
      %s35 = sshll.u32 [#allocation4], 4
      %s36 = int_to_ptr.vmem [resolvable:$true] %s35
      %41 = dma.hbm_to_vmem [thread:$0]  %s34, 1024, %s36, [#allocation5], 64, 64, 4
    $region17: #{feedforward_forward.1} parent=1 // pred_fallthru
      _
    // Predicated region
    $region18: #{feedforward_forward.1} parent=1 // pred_check
      _
    $region19: #{feedforward_forward.1} parent=1 // pred_check_branch
      %43 = sbr.rel (0) target = $region21
    $region20: #{feedforward_forward.1} parent=1 // pred_region
      _
    $region21: #{feedforward_forward.1} parent=1 // pred_fallthru
      _
    // Predicated region
    $region22: #{feedforward_forward.1} parent=1 // pred_check
      _
    $region23: #{feedforward_forward.1} parent=1 // pred_check_branch
      %45 = sbr.rel (0) target = $region25
    $region24: #{feedforward_forward.1} parent=1 // pred_region
      %47 = dma.done [#allocation3], 1024
    $region25: #{feedforward_forward.1} parent=1 // pred_fallthru
      _
    // Predicated region
    $region26: #{feedforward_forward.1} parent=1 // pred_check
      _
    $region27: #{feedforward_forward.1} parent=1 // pred_check_branch
      %49 = sbr.rel (0) target = $region29
    $region28: #{feedforward_forward.1} parent=1 // pred_region
      %51 = dma.done [#allocation5], 1024
    $region29: #{feedforward_forward.1} parent=1 // pred_fallthru
      _
    %v52 = vld [vmem:[%s0] sm:$0xf]
    %v53 = vld [vmem:[#allocation2] sm:$0xf]
    %v54 = vld [vmem:[#allocation2 + $0x4] sm:$0xf]
    %v55 = vld [vmem:[#allocation2 + $0x8] sm:$0xf]
    %v56 = vld [vmem:[#allocation2 + $0xc] sm:$0xf]
    %v57 = vld [vmem:[#allocation2 + $0x10] sm:$0xf]
    %v58 = vld [vmem:[#allocation2 + $0x14] sm:$0xf]
    %v59 = vld [vmem:[#allocation2 + $0x18] sm:$0xf]
    %v60 = vld [vmem:[#allocation2 + $0x1c] sm:$0xf]
    %v61 = vld [vmem:[#allocation2 + $0x20] sm:$0xf]
    %v62 = vld [vmem:[#allocation2 + $0x24] sm:$0xf]
    %v63 = vld [vmem:[#allocation2 + $0x28] sm:$0xf]
    %v64 = vld [vmem:[#allocation2 + $0x2c] sm:$0xf]
    %v65 = vld [vmem:[#allocation2 + $0x30] sm:$0xf]
    %v66 = vld [vmem:[#allocation2 + $0x34] sm:$0xf]
    %v67 = vld [vmem:[#allocation2 + $0x38] sm:$0xf]
    %v68 = vld [vmem:[#allocation2 + $0x3c] sm:$0xf]
    %v69 = vld [vmem:[%s2] sm:$0x1]
    %v71 = vperm.slane %v69, 0
    %v89 = vunpack.c.l.b16 %v53
    %v90 = vunpack.c.l.b16 %v54
    %v91 = vunpack.c.l.b16 %v55
    %v92 = vunpack.c.l.b16 %v56
    %v93 = vunpack.c.l.b16 %v57
    %v94 = vunpack.c.l.b16 %v58
    %v95 = vunpack.c.l.b16 %v59
    %v96 = vunpack.c.l.b16 %v60
    %v97 = vunpack.c.l.b16 %v61
    %v98 = vunpack.c.l.b16 %v62
    %v99 = vunpack.c.l.b16 %v63
    %v100 = vunpack.c.l.b16 %v64
    %v101 = vunpack.c.l.b16 %v65
    %v102 = vunpack.c.l.b16 %v66
    %v103 = vunpack.c.l.b16 %v67
    %v104 = vunpack.c.l.b16 %v68
    %v105 = vpack.c.b16 %v90, %v89
    %v106 = vpack.c.b16 %v92, %v91
    %v107 = vpack.c.b16 %v94, %v93
    %v108 = vpack.c.b16 %v96, %v95
    %v109 = vpack.c.b16 %v98, %v97
    %v110 = vpack.c.b16 %v100, %v99
    %v111 = vpack.c.b16 %v102, %v101
    %v112 = vpack.c.b16 %v104, %v103
    %121 = vmatpush.bf16.msra.mxu0 %v112
    %122 = vmatpush.bf16.msra.mxu0 %v111
    %123 = vmatpush.bf16.msra.mxu0 %v110
    %124 = vmatpush.bf16.msra.mxu0 %v109
    %125 = vmatpush.bf16.msra.mxu0 %v108
    %126 = vmatpush.bf16.msra.mxu0 %v107
    %127 = vmatpush.bf16.msra.mxu0 %v106
    %128 = vmatpush.bf16.msra.mxu0 %v105
    %129 = vmatmul.bf16.gmra.mxu0 %v52
    %v130 = vpop.f32.mrf.mxu0
    %v131 = vadd.f32 %v71, %v130
    %v132 = vpop.f32.mrf.mxu0
    %133 = vdwg.mxu0
    %v134 = vmax.f32 %v131, 0.0
    %v135 = vpack.c.bf16 %v134, %v134
    %v136 = vld [vmem:[#allocation4] sm:$0xf]
    %v137 = vld [vmem:[#allocation4 + $0x4] sm:$0xf]
    %v138 = vld [vmem:[#allocation4 + $0x8] sm:$0xf]
    %v139 = vld [vmem:[#allocation4 + $0xc] sm:$0xf]
    %v140 = vld [vmem:[#allocation4 + $0x10] sm:$0xf]
    %v141 = vld [vmem:[#allocation4 + $0x14] sm:$0xf]
    %v142 = vld [vmem:[#allocation4 + $0x18] sm:$0xf]
    %v143 = vld [vmem:[#allocation4 + $0x1c] sm:$0xf]
    %v144 = vld [vmem:[#allocation4 + $0x20] sm:$0xf]
    %v145 = vld [vmem:[#allocation4 + $0x24] sm:$0xf]
    %v146 = vld [vmem:[#allocation4 + $0x28] sm:$0xf]
    %v147 = vld [vmem:[#allocation4 + $0x2c] sm:$0xf]
    %v148 = vld [vmem:[#allocation4 + $0x30] sm:$0xf]
    %v149 = vld [vmem:[#allocation4 + $0x34] sm:$0xf]
    %v150 = vld [vmem:[#allocation4 + $0x38] sm:$0xf]
    %v151 = vld [vmem:[#allocation4 + $0x3c] sm:$0xf]
    %v152 = vld [vmem:[%s4] sm:$0x1]
    %v154 = vperm.slane %v152, 0
    %v172 = vunpack.c.l.b16 %v136
    %v173 = vunpack.c.l.b16 %v137
    %v174 = vunpack.c.l.b16 %v138
    %v175 = vunpack.c.l.b16 %v139
    %v176 = vunpack.c.l.b16 %v140
    %v177 = vunpack.c.l.b16 %v141
    %v178 = vunpack.c.l.b16 %v142
    %v179 = vunpack.c.l.b16 %v143
    %v180 = vunpack.c.l.b16 %v144
    %v181 = vunpack.c.l.b16 %v145
    %v182 = vunpack.c.l.b16 %v146
    %v183 = vunpack.c.l.b16 %v147
    %v184 = vunpack.c.l.b16 %v148
    %v185 = vunpack.c.l.b16 %v149
    %v186 = vunpack.c.l.b16 %v150
    %v187 = vunpack.c.l.b16 %v151
    %v188 = vpack.c.b16 %v173, %v172
    %v189 = vpack.c.b16 %v175, %v174
    %v190 = vpack.c.b16 %v177, %v176
    %v191 = vpack.c.b16 %v179, %v178
    %v192 = vpack.c.b16 %v181, %v180
    %v193 = vpack.c.b16 %v183, %v182
    %v194 = vpack.c.b16 %v185, %v184
    %v195 = vpack.c.b16 %v187, %v186
    %204 = vmatpush.bf16.msra.mxu0 %v195
    %205 = vmatpush.bf16.msra.mxu0 %v194
    %206 = vmatpush.bf16.msra.mxu0 %v193
    %207 = vmatpush.bf16.msra.mxu0 %v192
    %208 = vmatpush.bf16.msra.mxu0 %v191
    %209 = vmatpush.bf16.msra.mxu0 %v190
    %210 = vmatpush.bf16.msra.mxu0 %v189
    %211 = vmatpush.bf16.msra.mxu0 %v188
    %212 = vmatmul.bf16.gmra.mxu0 %v135
    %v213 = vpop.f32.mrf.mxu0
    %v214 = vadd.f32 %v154, %v213
    %v215 = vpop.f32.mrf.mxu0
    %216 = vdwg.mxu0
    %217 = vmax.xlane.f32.xlu0 %v214
    %v218 = vpop.xlane.xlu0 %217
    %v219 = vsub.f32 %v214, %v218
    %v220 = vmul.f32 %v219, 1.442695
    %v221 = vpow.pop %v220
    %222 = vadd.xlane.f32.xlu0 %v221
    %v223 = vpop.xlane.xlu0 %222
    %v224 = vrcp.pop %v223
    %v225 = vmul.f32 %v223, %v224
    %v226 = vsub.f32 1.0, %v225
    %v227 = vmul.f32 %v224, %v226
    %v228 = vadd.f32 %v224, %v227
    %vm229 = vweird.f32 %v223
    %vm230 = vweird.f32 %v224
    %vm231 = vmor %vm229, %vm230
    %v232 = vsel %vm231, %v224, %v228
    %v233 = vand.u32 2147483647, %v223
    %vm234 = vcmp.eq.f32.partialorder %v233, 8.507059e+37
    %v235 = vand.u32 %v223, 2147483648
    %v236 = vor.u32 1.1754944e-38, %v235
    %v237 = vsel %vm234, %v236, %v232
    %v238 = vmul.f32 %v221, %v237
    %239 = vst [vmem:[%s5] sm:$0xff] %v238
    // Predicated region
    $region30: #{feedforward_forward.1} parent=1 // pred_check
      _
    $region31: #{feedforward_forward.1} parent=1 // pred_check_branch
      %241 = sbr.rel (0) target = $region33
    $region32: #{feedforward_forward.1} parent=1 // pred_region
      _
    $region33: #{feedforward_forward.1} parent=1 // pred_fallthru
      _
    // Predicated region
    $region34: #{feedforward_forward.1} parent=1 // pred_check
      _
    $region35: #{feedforward_forward.1} parent=1 // pred_check_branch
      %243 = sbr.rel (0) target = $region37
    $region36: #{feedforward_forward.1} parent=1 // pred_region
      _
    $region37: #{feedforward_forward.1} parent=1 // pred_fallthru
      _
    %244 = vsyncpa [#allocation3], 1
    %245 = vsyncpa [#allocation5], 1

</llo_original>
